<compile_context>
chip_gen: v7x
topology: tpu7x:2x2x1
jax: 0.10.0
libtpu: 0.0.40
codegen_flags: <defaults>
</compile_context>

<pallas_src>
import functools

import jax
import jax.numpy as jnp
from jax.experimental import pallas as pl
from jax.experimental.pallas import tpu as pltpu


def dqn_kernel(x_ref, wb1_ref, wb2_ref, wb3_ref, o_ref):
    # x_ref : (S, tb)  batch-on-lanes tile (lane-dense).
    # wbN_ref: (out_features, in_features + 1) = [W | b], VMEM-resident.
    x = x_ref[...]

    s = wb1_ref.shape[1] - 1
    h1 = jnp.dot(wb1_ref[:, :s], x, preferred_element_type=jnp.float32)
    h1 = jnp.maximum(h1 + wb1_ref[:, s:], 0.0)            # (24, tb)

    h = wb2_ref.shape[1] - 1
    h2 = jnp.dot(wb2_ref[:, :h], h1, preferred_element_type=jnp.float32)
    h2 = jnp.maximum(h2 + wb2_ref[:, h:], 0.0)             # (24, tb)

    h = wb3_ref.shape[1] - 1
    out = jnp.dot(wb3_ref[:, :h], h2, preferred_element_type=jnp.float32)
    o_ref[...] = (out + wb3_ref[:, h:]).astype(o_ref.dtype)  # (A, tb), lane-dense


def _round_up(n, m):
    return ((n + m - 1) // m) * m


@functools.partial(jax.jit, static_argnames=("num_steps", "max_tile_b"))
def dq_network(x, params, *, num_steps=None, max_tile_b=4096):
    """Fused forward pass of DQNetwork.

    x: (B, state_size) float32
    params: torch-native layout:
        w1 (24, S), b1 (24, 1), w2 (24, 24), b2 (24, 1), w3 (A, 24), b3 (A, 1)
    returns (B, A) float32 Q-values.
    """
    w1, b1 = params["w1"], params["b1"]
    w2, b2 = params["w2"], params["b2"]
    w3, b3 = params["w3"], params["b3"]
    B, S = x.shape
    A = w3.shape[0]

    # One grid step per TensorCore: 1 on v5e/v6e (single TC), 2 on dual-TC v7x.
    if num_steps is None:
        try:
            kind = jax.devices()[0].device_kind.lower()
        except Exception:
            kind = ""
        num_steps = 2 if ("v7" in kind or "7x" in kind) else 1
    if B <= 128:
        num_steps = 1          # no point splitting a sub-tile batch

    # Lane-dense batch tiles: tb multiple of 128, padding at most tb-1 columns.
    n = max(num_steps, -(-_round_up(B, 128) // max_tile_b))
    tb = _round_up(-(-B // n), 128)
    Bp = tb * n

    # Pack [W | b] so each layer is a single VMEM-resident operand (constant
    # index_map -> never re-DMA'd across grid steps).
    wb1 = jnp.concatenate([w1, b1], axis=1)   # (24, S+1)
    wb2 = jnp.concatenate([w2, b2], axis=1)   # (24, 25)
    wb3 = jnp.concatenate([w3, b3], axis=1)   # (A, 25)

    # Batch-on-lanes input: (S, Bp); only the ragged lane tail is padded.
    xt = jnp.pad(x.T, ((0, 0), (0, Bp - B)))

    def const_spec(shape):
        return pl.BlockSpec(shape, lambda i: (0, 0))

    out = pl.pallas_call(
        dqn_kernel,
        out_shape=jax.ShapeDtypeStruct((A, Bp), jnp.float32),
        grid=(n,),
        in_specs=[
            pl.BlockSpec((S, tb), lambda i: (0, i)),   # streamed batch tiles
            const_spec(wb1.shape),
            const_spec(wb2.shape),
            const_spec(wb3.shape),
        ],
        out_specs=pl.BlockSpec((A, tb), lambda i: (0, i)),
        compiler_params=pltpu.CompilerParams(
            dimension_semantics=("parallel",)),
    )(xt, wb1, wb2, wb3)

    return out[:, :B].T


def init_params(key, state_size, action_size, hidden=24):
    """nn.Linear-style init: W (out, in), b (out, 1), U(-1/sqrt(in), 1/sqrt(in))."""
    ks = jax.random.split(key, 6)

    def linear(kw, kb, fan_in, fan_out):
        bound = 1.0 / jnp.sqrt(jnp.float32(fan_in))
        w = jax.random.uniform(kw, (fan_out, fan_in), jnp.float32, -bound, bound)
        b = jax.random.uniform(kb, (fan_out, 1), jnp.float32, -bound, bound)
        return w, b

    w1, b1 = linear(ks[0], ks[1], state_size, hidden)
    w2, b2 = linear(ks[2], ks[3], hidden, hidden)
    w3, b3 = linear(ks[4], ks[5], hidden, action_size)
    return {"w1": w1, "b1": b1, "w2": w2, "b2": b2, "w3": w3, "b3": b3}


def dq_network_ref(x, p):
    """Pure-JAX float32 reference (same math as torch DQNetwork.forward)."""
    h = jnp.maximum(x @ p["w1"].T + p["b1"][:, 0], 0.0)
    h = jnp.maximum(h @ p["w2"].T + p["b2"][:, 0], 0.0)
    return h @ p["w3"].T + p["b3"][:, 0]


if __name__ == "__main__":
    state_size = 16
    action_size = 4

    key = jax.random.PRNGKey(0)
    k_params, k_x1, k_x2 = jax.random.split(key, 3)
    params = init_params(k_params, state_size, action_size)

    # Tolerance covers possible f32-dot precision-path differences between the
    # XLA reference and the in-kernel MXU matmuls; real layout/bias/ReLU bugs
    # would show up as O(0.1) errors.
    ATOL = RTOL = 1e-2

    # Small eval batch (single grid step, ragged lane tail padded to 128).
    batch = 8
    x_small = jax.random.normal(k_x1, (batch, state_size), jnp.float32)
    out_small = jax.block_until_ready(dq_network(x_small, params))
    ref_small = dq_network_ref(x_small, params)
    assert out_small.shape == (batch, action_size)
    assert jnp.all(jnp.isfinite(out_small))
    assert jnp.allclose(out_small, ref_small, atol=ATOL, rtol=RTOL)

    # Replay-minibatch batch: exercises the auto num_steps path and padding
    # (600 -> 640 columns on single-TC chips, 2 x 384 on v7x).
    big_batch = 600
    x_big = jax.random.normal(k_x2, (big_batch, state_size), jnp.float32)
    out_big = jax.block_until_ready(dq_network(x_big, params))
    ref_big = dq_network_ref(x_big, params)
    assert out_big.shape == (big_batch, action_size)
    assert jnp.all(jnp.isfinite(out_big))
    assert jnp.allclose(out_big, ref_big, atol=ATOL, rtol=RTOL)

    # Explicit 2-step parallel grid (the dual-TC v7x configuration) for coverage.
    out_big2 = jax.block_until_ready(dq_network(x_big, params, num_steps=2))
    assert jnp.allclose(out_big2, ref_big, atol=ATOL, rtol=RTOL)

    print("KERNEL_OK")
</pallas_src>

<mosaic_0001>
module attributes {stable_mosaic.version = 11 : i64} {
  func.func @dqn_kernel(%arg0: i32, %arg1: memref<16x128xf32, #tpu.memory_space<vmem>>, %arg2: memref<24x17xf32, #tpu.memory_space<vmem>>, %arg3: memref<24x25xf32, #tpu.memory_space<vmem>>, %arg4: memref<4x25xf32, #tpu.memory_space<vmem>>, %arg5: memref<4x128xf32, #tpu.memory_space<vmem>>) attributes {dimension_semantics = [#tpu.dimension_semantics<parallel>], iteration_bounds = array<i64: 1>, scalar_prefetch = 0 : i64, scratch_operands = 0 : i64, tpu.core_type = #tpu.core_type<tc>, window_params = [{transform_indices = @transform_0, window_bounds = array<i64: 16, 128>}, {pipeline_mode = #tpu.pipeline_mode<synchronous>, transform_indices = @transform_1, window_bounds = array<i64: 24, 17>}, {pipeline_mode = #tpu.pipeline_mode<synchronous>, transform_indices = @transform_2, window_bounds = array<i64: 24, 25>}, {pipeline_mode = #tpu.pipeline_mode<synchronous>, transform_indices = @transform_3, window_bounds = array<i64: 4, 25>}, {transform_indices = @transform_4, window_bounds = array<i64: 4, 128>}]} {
    %c0 = arith.constant 0 : index
    %c0_0 = arith.constant 0 : index
    %0 = vector.load %arg1[%c0, %c0_0] : memref<16x128xf32, #tpu.memory_space<vmem>>, vector<16x128xf32>
    %c0_1 = arith.constant 0 : index
    %c0_2 = arith.constant 0 : index
    %1 = vector.load %arg2[%c0_1, %c0_2] : memref<24x17xf32, #tpu.memory_space<vmem>>, vector<24x16xf32>
    %cst = arith.constant dense<0.000000e+00> : vector<24x128xf32>
    %2 = tpu.matmul %1, %0, %cst {dimension_numbers = #tpu.dot_dimension_numbers<[1], [0], [0], [1], [0, 0, 1, 1], [], []>} : vector<24x16xf32>, vector<16x128xf32>, vector<24x128xf32> -> vector<24x128xf32>
    %c0_3 = arith.constant 0 : index
    %c16 = arith.constant 16 : index
    %3 = vector.load %arg2[%c0_3, %c16] : memref<24x17xf32, #tpu.memory_space<vmem>>, vector<24x1xf32>
    %4 = vector.broadcast %3 : vector<24x1xf32> to vector<24x128xf32>
    %5 = arith.addf %2, %4 : vector<24x128xf32>
    %cst_4 = arith.constant 0.000000e+00 : f32
    %6 = vector.broadcast %cst_4 : f32 to vector<24x128xf32>
    %7 = arith.maximumf %5, %6 : vector<24x128xf32>
    %c0_5 = arith.constant 0 : index
    %c0_6 = arith.constant 0 : index
    %8 = vector.load %arg3[%c0_5, %c0_6] : memref<24x25xf32, #tpu.memory_space<vmem>>, vector<24x24xf32>
    %cst_7 = arith.constant dense<0.000000e+00> : vector<24x128xf32>
    %9 = tpu.matmul %8, %7, %cst_7 {dimension_numbers = #tpu.dot_dimension_numbers<[1], [0], [0], [1], [0, 0, 1, 1], [], []>} : vector<24x24xf32>, vector<24x128xf32>, vector<24x128xf32> -> vector<24x128xf32>
    %c0_8 = arith.constant 0 : index
    %c24 = arith.constant 24 : index
    %10 = vector.load %arg3[%c0_8, %c24] : memref<24x25xf32, #tpu.memory_space<vmem>>, vector<24x1xf32>
    %11 = vector.broadcast %10 : vector<24x1xf32> to vector<24x128xf32>
    %12 = arith.addf %9, %11 : vector<24x128xf32>
    %cst_9 = arith.constant 0.000000e+00 : f32
    %13 = vector.broadcast %cst_9 : f32 to vector<24x128xf32>
    %14 = arith.maximumf %12, %13 : vector<24x128xf32>
    %c0_10 = arith.constant 0 : index
    %c0_11 = arith.constant 0 : index
    %15 = vector.load %arg4[%c0_10, %c0_11] : memref<4x25xf32, #tpu.memory_space<vmem>>, vector<4x24xf32>
    %cst_12 = arith.constant dense<0.000000e+00> : vector<4x128xf32>
    %16 = tpu.matmul %15, %14, %cst_12 {dimension_numbers = #tpu.dot_dimension_numbers<[1], [0], [0], [1], [0, 0, 1, 1], [], []>} : vector<4x24xf32>, vector<24x128xf32>, vector<4x128xf32> -> vector<4x128xf32>
    %c0_13 = arith.constant 0 : index
    %c24_14 = arith.constant 24 : index
    %17 = vector.load %arg4[%c0_13, %c24_14] : memref<4x25xf32, #tpu.memory_space<vmem>>, vector<4x1xf32>
    %18 = vector.broadcast %17 : vector<4x1xf32> to vector<4x128xf32>
    %19 = arith.addf %16, %18 : vector<4x128xf32>
    %c0_15 = arith.constant 0 : index
    %c0_16 = arith.constant 0 : index
    %20 = vector.load %arg5[%c0_15, %c0_16] : memref<4x128xf32, #tpu.memory_space<vmem>>, vector<4x128xf32>
    tpu.vector_store %arg5[%c0_15, %c0_16], %19 {strides = array<i32>} : memref<4x128xf32, #tpu.memory_space<vmem>>, vector<4x128xf32>,
    return
  }
  func.func @transform_0(%arg0: i32) -> (i32, i32) {
    %c0_i32 = arith.constant 0 : i32
    %c0_i32_0 = arith.constant 0 : i32
    return %c0_i32, %arg0 : i32, i32
  }
  func.func @transform_1(%arg0: i32) -> (i32, i32) {
    %c0_i32 = arith.constant 0 : i32
    %c0_i32_0 = arith.constant 0 : i32
    %c0_i32_1 = arith.constant 0 : i32
    return %c0_i32, %c0_i32_0 : i32, i32
  }
  func.func @transform_2(%arg0: i32) -> (i32, i32) {
    %c0_i32 = arith.constant 0 : i32
    %c0_i32_0 = arith.constant 0 : i32
    %c0_i32_1 = arith.constant 0 : i32
    return %c0_i32, %c0_i32_0 : i32, i32
  }
  func.func @transform_3(%arg0: i32) -> (i32, i32) {
    %c0_i32 = arith.constant 0 : i32
    %c0_i32_0 = arith.constant 0 : i32
    %c0_i32_1 = arith.constant 0 : i32
    return %c0_i32, %c0_i32_0 : i32, i32
  }
  func.func @transform_4(%arg0: i32) -> (i32, i32) {
    %c0_i32 = arith.constant 0 : i32
    %c0_i32_0 = arith.constant 0 : i32
    return %c0_i32, %arg0 : i32, i32
  }
}

</mosaic_0001>

<llo_original>
// kernel: dq_network.1
$region0: #{dq_network.1}
  #allocation0 [shape = 'u32[]', space=smem, size = 0x4, offset = 0x4, fixed_abs, tag = 'smem constant byte address 0x4 - core index']
  #allocation1 [shape = 'u32[144,128]{1,0:T(1,128)}', space=vmem, size = 0x12000, scoped, tag = 'internal scratch']
  %s0 = inlined_call_operand.vmem [shape: f32[16,128], index: 0, kind: input, shape index: {}]
  %s1 = inlined_call_operand.vmem [shape: f32[24,17], index: 1, kind: input, shape index: {}]
  %s2 = inlined_call_operand.vmem [shape: f32[24,25], index: 2, kind: input, shape index: {}]
  %s3 = inlined_call_operand.vmem [shape: f32[4,25], index: 3, kind: input, shape index: {}]
  %s4 = inlined_call_operand.vmem [shape: f32[4,128], index: 4, kind: output, shape index: {}]
  %s5 = sld [smem:[#allocation0]]
  $region26: #{dq_network.1} parent=0
    _
  %s7 = ssub.s32 1, %s5
  %s8 = scalar_select 0, %s7, %s5
  // Predicated region
  $region2: #{dq_network.1} parent=0 // pred_check
    _
  $region3: #{dq_network.1} parent=0 // pred_check_branch
    %10 = sbr.rel (0) target = $region5
  $region4: #{dq_network.1} parent=0 // pred_region
    _
  $region5: #{dq_network.1} parent=0 // pred_fallthru
    _
  // Predicated region
  $region6: #{dq_network.1} parent=0 // pred_check
    _
  $region7: #{dq_network.1} parent=0 // pred_check_branch
    %12 = sbr.rel (0) target = $region9
  $region8: #{dq_network.1} parent=0 // pred_region
    _
  $region9: #{dq_network.1} parent=0 // pred_fallthru
    _
  // Predicated region
  $region10: #{dq_network.1} parent=0 // pred_check
    _
  $region11: #{dq_network.1} parent=0 // pred_check_branch
    %14 = sbr.rel (0) target = $region13
  $region12: #{dq_network.1} parent=0 // pred_region
    _
  $region13: #{dq_network.1} parent=0 // pred_fallthru
    _
  // Predicated region
  $region14: #{dq_network.1} parent=0 // pred_check
    _
  $region15: #{dq_network.1} parent=0 // pred_check_branch
    %16 = sbr.rel (0) target = $region17
  $region16: #{dq_network.1} parent=0 // pred_region
    _
  $region17: #{dq_network.1} parent=0 // pred_fallthru
    _
  %v17 = vld [vmem:[%s0] sm:$0xff]
  %v18 = vld [vmem:[%s0 + $0x8] sm:$0xff]
  %v19 = vld [vmem:[%s1] sm:$0xff]
  %v20 = vld [vmem:[%s1 + $0x8] sm:$0xff]
  %v21 = vld [vmem:[%s1 + $0x10] sm:$0xff]
  %23 = vset.pattern.permute.xlu0 16
  %24 = vperm.xlu0 %23, %v19
  %v25 = vpop.permute.xlu0 %24
  %28 = vset.pattern.permute.xlu0 16
  %29 = vperm.xlu0 %28, %v20
  %v30 = vpop.permute.xlu0 %29
  %33 = vset.pattern.permute.xlu0 16
  %34 = vperm.xlu0 %33, %v21
  %v35 = vpop.permute.xlu0 %34
  %vm37 = vcmask 130048
  %v38 = vsel %vm37, %v19, 0
  %v40 = vsel %vm37, %v20, 0
  %v42 = vsel %vm37, %v21, 0
  %44 = vmatprep.subr.mxu0 0.0
  %45 = vmatpush1.msra.mxu0 %v17
  %46 = vmatprep.subr.mxu0 0.0
  %47 = vmatpush1.msra.mxu0 %v18
  %48 = vmatprep.subr.mxu0 0.0
  %49 = vmatpush1.msra.mxu0 0.0
  %50 = vmatprep.subr.mxu0 0.0
  %51 = vmatpush1.msra.mxu0 0.0
  %52 = vmatprep.subr.mxu0 0.0
  %53 = vmatpush1.msra.mxu0 0.0
  %54 = vmatprep.subr.mxu0 0.0
  %55 = vmatpush1.msra.mxu0 0.0
  %56 = vmatprep.subr.mxu0 0.0
  %57 = vmatpush1.msra.mxu0 0.0
  %58 = vmatprep.subr.mxu0 0.0
  %59 = vmatpush1.msra.mxu0 0.0
  %60 = vmatprep.subr.mxu0 0.0
  %61 = vmatpush1.msra.mxu0 0.0
  %62 = vmatprep.subr.mxu0 0.0
  %63 = vmatpush1.msra.mxu0 0.0
  %64 = vmatprep.subr.mxu0 0.0
  %65 = vmatpush1.msra.mxu0 0.0
  %66 = vmatprep.subr.mxu0 0.0
  %67 = vmatpush1.msra.mxu0 0.0
  %68 = vmatprep.subr.mxu0 0.0
  %69 = vmatpush1.msra.mxu0 0.0
  %70 = vmatprep.subr.mxu0 0.0
  %71 = vmatpush1.msra.mxu0 0.0
  %72 = vmatprep.subr.mxu0 0.0
  %73 = vmatpush1.msra.mxu0 0.0
  %74 = vmatprep.subr.mxu0 0.0
  %75 = vmatpush1.msra.mxu0 0.0
  %76 = vmatprep.subr.mxu0 0.0
  %77 = vmatpush1.msra.mxu0 0.0
  %78 = vmatprep.subr.mxu0 0.0
  %79 = vmatpush1.msra.mxu0 0.0
  %80 = vmatprep.subr.mxu0 0.0
  %81 = vmatpush1.msra.mxu0 0.0
  %82 = vmatprep.subr.mxu0 0.0
  %83 = vmatpush1.msra.mxu0 0.0
  %84 = vmatprep.subr.mxu0 0.0
  %85 = vmatpush1.msra.mxu0 0.0
  %86 = vmatprep.subr.mxu0 0.0
  %87 = vmatpush1.msra.mxu0 0.0
  %88 = vmatprep.subr.mxu0 0.0
  %89 = vmatpush1.msra.mxu0 0.0
  %90 = vmatprep.subr.mxu0 0.0
  %91 = vmatpush1.msra.mxu0 0.0
  %92 = vmatprep.subr.mxu0 0.0
  %93 = vmatpush1.msra.mxu0 0.0
  %94 = vmatprep.subr.mxu0 0.0
  %95 = vmatpush1.msra.mxu0 0.0
  %96 = vmatprep.subr.mxu0 0.0
  %97 = vmatpush1.msra.mxu0 0.0
  %98 = vmatprep.subr.mxu0 0.0
  %99 = vmatpush1.msra.mxu0 0.0
  %100 = vmatprep.subr.mxu0 0.0
  %101 = vmatpush1.msra.mxu0 0.0
  %102 = vmatprep.subr.mxu0 0.0
  %103 = vmatpush1.msra.mxu0 0.0
  %104 = vmatprep.subr.mxu0 0.0
  %105 = vmatpush1.msra.mxu0 0.0
  %106 = vmatprep.subr.mxu0 0.0
  %107 = vmatpush1.msra.mxu0 0.0
  %108 = vmatprep.mubr.f32.mxu0 0.0
  %109 = vmatmul.mubr.f32.gmra.mrb[0].mxu0 %v38
  %v110 = vpop.f32.mrb[0].mxu0
  %v111 = vadd.f32 %v25, %v110
  %v112 = vpop.f32.mrb[0].mxu0
  %113 = vmatprep.mubr.f32.mxu0 0.0
  %114 = vmatmul.mubr.f32.gmra.mrb[0].mxu0 %v40
  %v115 = vpop.f32.mrb[0].mxu0
  %v116 = vadd.f32 %v30, %v115
  %v117 = vpop.f32.mrb[0].mxu0
  %118 = vmatprep.mubr.f32.mxu0 0.0
  %119 = vmatmul.mubr.f32.gmra.mrb[0].mxu0 %v42
  %v120 = vpop.f32.mrb[0].mxu0
  %v121 = vadd.f32 %v35, %v120
  %v122 = vpop.f32.mrb[0].mxu0
  %123 = vdwg.mxu0
  %v124 = vmax.f32 %v111, 0.0
  %v125 = vmax.f32 %v116, 0.0
  %v126 = vmax.f32 %v121, 0.0
  %v127 = vld [vmem:[%s2] sm:$0xff]
  %v128 = vld [vmem:[%s2 + $0x8] sm:$0xff]
  %v129 = vld [vmem:[%s2 + $0x10] sm:$0xff]
  %131 = vset.pattern.permute.xlu0 24
  %132 = vperm.xlu0 %131, %v127
  %v133 = vpop.permute.xlu0 %132
  %136 = vset.pattern.permute.xlu0 24
  %137 = vperm.xlu0 %136, %v128
  %v138 = vpop.permute.xlu0 %137
  %141 = vset.pattern.permute.xlu0 24
  %142 = vperm.xlu0 %141, %v129
  %v143 = vpop.permute.xlu0 %142
  %vm145 = vcmask 195584
  %v146 = vsel %vm145, %v127, 0
  %v148 = vsel %vm145, %v128, 0
  %v150 = vsel %vm145, %v129, 0
  %152 = vmatprep.subr.mxu0 0.0
  %153 = vmatpush1.msra.mxu0 %v124
  %154 = vmatprep.subr.mxu0 0.0
  %155 = vmatpush1.msra.mxu0 %v125
  %156 = vmatprep.subr.mxu0 0.0
  %157 = vmatpush1.msra.mxu0 %v126
  %158 = vmatprep.subr.mxu0 0.0
  %159 = vmatpush1.msra.mxu0 0.0
  %160 = vmatprep.subr.mxu0 0.0
  %161 = vmatpush1.msra.mxu0 0.0
  %162 = vmatprep.subr.mxu0 0.0
  %163 = vmatpush1.msra.mxu0 0.0
  %164 = vmatprep.subr.mxu0 0.0
  %165 = vmatpush1.msra.mxu0 0.0
  %166 = vmatprep.subr.mxu0 0.0
  %167 = vmatpush1.msra.mxu0 0.0
  %168 = vmatprep.subr.mxu0 0.0
  %169 = vmatpush1.msra.mxu0 0.0
  %170 = vmatprep.subr.mxu0 0.0
  %171 = vmatpush1.msra.mxu0 0.0
  %172 = vmatprep.subr.mxu0 0.0
  %173 = vmatpush1.msra.mxu0 0.0
  %174 = vmatprep.subr.mxu0 0.0
  %175 = vmatpush1.msra.mxu0 0.0
  %176 = vmatprep.subr.mxu0 0.0
  %177 = vmatpush1.msra.mxu0 0.0
  %178 = vmatprep.subr.mxu0 0.0
  %179 = vmatpush1.msra.mxu0 0.0
  %180 = vmatprep.subr.mxu0 0.0
  %181 = vmatpush1.msra.mxu0 0.0
  %182 = vmatprep.subr.mxu0 0.0
  %183 = vmatpush1.msra.mxu0 0.0
  %184 = vmatprep.subr.mxu0 0.0
  %185 = vmatpush1.msra.mxu0 0.0
  %186 = vmatprep.subr.mxu0 0.0
  %187 = vmatpush1.msra.mxu0 0.0
  %188 = vmatprep.subr.mxu0 0.0
  %189 = vmatpush1.msra.mxu0 0.0
  %190 = vmatprep.subr.mxu0 0.0
  %191 = vmatpush1.msra.mxu0 0.0
  %192 = vmatprep.subr.mxu0 0.0
  %193 = vmatpush1.msra.mxu0 0.0
  %194 = vmatprep.subr.mxu0 0.0
  %195 = vmatpush1.msra.mxu0 0.0
  %196 = vmatprep.subr.mxu0 0.0
  %197 = vmatpush1.msra.mxu0 0.0
  %198 = vmatprep.subr.mxu0 0.0
  %199 = vmatpush1.msra.mxu0 0.0
  %200 = vmatprep.subr.mxu0 0.0
  %201 = vmatpush1.msra.mxu0 0.0
  %202 = vmatprep.subr.mxu0 0.0
  %203 = vmatpush1.msra.mxu0 0.0
  %204 = vmatprep.subr.mxu0 0.0
  %205 = vmatpush1.msra.mxu0 0.0
  %206 = vmatprep.subr.mxu0 0.0
  %207 = vmatpush1.msra.mxu0 0.0
  %208 = vmatprep.subr.mxu0 0.0
  %209 = vmatpush1.msra.mxu0 0.0
  %210 = vmatprep.subr.mxu0 0.0
  %211 = vmatpush1.msra.mxu0 0.0
  %212 = vmatprep.subr.mxu0 0.0
  %213 = vmatpush1.msra.mxu0 0.0
  %214 = vmatprep.subr.mxu0 0.0
  %215 = vmatpush1.msra.mxu0 0.0
  %216 = vmatprep.mubr.f32.mxu0 0.0
  %217 = vmatmul.mubr.f32.gmra.mrb[0].mxu0 %v146
  %v218 = vpop.f32.mrb[0].mxu0
  %v219 = vadd.f32 %v133, %v218
  %v220 = vpop.f32.mrb[0].mxu0
  %221 = vmatprep.mubr.f32.mxu0 0.0
  %222 = vmatmul.mubr.f32.gmra.mrb[0].mxu0 %v148
  %v223 = vpop.f32.mrb[0].mxu0
  %v224 = vadd.f32 %v138, %v223
  %v225 = vpop.f32.mrb[0].mxu0
  %226 = vmatprep.mubr.f32.mxu0 0.0
  %227 = vmatmul.mubr.f32.gmra.mrb[0].mxu0 %v150
  %v228 = vpop.f32.mrb[0].mxu0
  %v229 = vadd.f32 %v143, %v228
  %v230 = vpop.f32.mrb[0].mxu0
  %231 = vdwg.mxu0
  %v232 = vmax.f32 %v219, 0.0
  %v233 = vmax.f32 %v224, 0.0
  %v234 = vmax.f32 %v229, 0.0
  %v235 = vld [vmem:[%s3] sm:$0xf]
  %237 = vset.pattern.permute.xlu0 24
  %238 = vperm.xlu0 %237, %v235
  %v239 = vpop.permute.xlu0 %238
  %v241 = vsel %vm145, %v235, 0
  %243 = vmatprep.subr.mxu0 0.0
  %244 = vmatpush1.msra.mxu0 %v232
  %245 = vmatprep.subr.mxu0 0.0
  %246 = vmatpush1.msra.mxu0 %v233
  %247 = vmatprep.subr.mxu0 0.0
  %248 = vmatpush1.msra.mxu0 %v234
  %249 = vmatprep.subr.mxu0 0.0
  %250 = vmatpush1.msra.mxu0 0.0
  %251 = vmatprep.subr.mxu0 0.0
  %252 = vmatpush1.msra.mxu0 0.0
  %253 = vmatprep.subr.mxu0 0.0
  %254 = vmatpush1.msra.mxu0 0.0
  %255 = vmatprep.subr.mxu0 0.0
  %256 = vmatpush1.msra.mxu0 0.0
  %257 = vmatprep.subr.mxu0 0.0
  %258 = vmatpush1.msra.mxu0 0.0
  %259 = vmatprep.subr.mxu0 0.0
  %260 = vmatpush1.msra.mxu0 0.0
  %261 = vmatprep.subr.mxu0 0.0
  %262 = vmatpush1.msra.mxu0 0.0
  %263 = vmatprep.subr.mxu0 0.0
  %264 = vmatpush1.msra.mxu0 0.0
  %265 = vmatprep.subr.mxu0 0.0
  %266 = vmatpush1.msra.mxu0 0.0
  %267 = vmatprep.subr.mxu0 0.0
  %268 = vmatpush1.msra.mxu0 0.0
  %269 = vmatprep.subr.mxu0 0.0
  %270 = vmatpush1.msra.mxu0 0.0
  %271 = vmatprep.subr.mxu0 0.0
  %272 = vmatpush1.msra.mxu0 0.0
  %273 = vmatprep.subr.mxu0 0.0
  %274 = vmatpush1.msra.mxu0 0.0
  %275 = vmatprep.subr.mxu0 0.0
  %276 = vmatpush1.msra.mxu0 0.0
  %277 = vmatprep.subr.mxu0 0.0
  %278 = vmatpush1.msra.mxu0 0.0
  %279 = vmatprep.subr.mxu0 0.0
  %280 = vmatpush1.msra.mxu0 0.0
  %281 = vmatprep.subr.mxu0 0.0
  %282 = vmatpush1.msra.mxu0 0.0
  %283 = vmatprep.subr.mxu0 0.0
  %284 = vmatpush1.msra.mxu0 0.0
  %285 = vmatprep.subr.mxu0 0.0
  %286 = vmatpush1.msra.mxu0 0.0
  %287 = vmatprep.subr.mxu0 0.0
  %288 = vmatpush1.msra.mxu0 0.0
  %289 = vmatprep.subr.mxu0 0.0
  %290 = vmatpush1.msra.mxu0 0.0
  %291 = vmatprep.subr.mxu0 0.0
  %292 = vmatpush1.msra.mxu0 0.0
  %293 = vmatprep.subr.mxu0 0.0
  %294 = vmatpush1.msra.mxu0 0.0
  %295 = vmatprep.subr.mxu0 0.0
  %296 = vmatpush1.msra.mxu0 0.0
  %297 = vmatprep.subr.mxu0 0.0
  %298 = vmatpush1.msra.mxu0 0.0
  %299 = vmatprep.subr.mxu0 0.0
  %300 = vmatpush1.msra.mxu0 0.0
  %301 = vmatprep.subr.mxu0 0.0
  %302 = vmatpush1.msra.mxu0 0.0
  %303 = vmatprep.subr.mxu0 0.0
  %304 = vmatpush1.msra.mxu0 0.0
  %305 = vmatprep.subr.mxu0 0.0
  %306 = vmatpush1.msra.mxu0 0.0
  %307 = vmatprep.mubr.f32.mxu0 0.0
  %308 = vmatmul.mubr.f32.gmra.mrb[0].mxu0 %v241
  %v309 = vpop.f32.mrb[0].mxu0
  %v310 = vadd.f32 %v239, %v309
  %v311 = vpop.f32.mrb[0].mxu0
  %312 = vdwg.mxu0
  %313 = vst [vmem:[%s4] sm:$0xf] %v310
  // Predicated region
  $region18: #{dq_network.1} parent=0 // pred_check
    _
  $region19: #{dq_network.1} parent=0 // pred_check_branch
    %315 = sbr.rel (0) target = $region21
  $region20: #{dq_network.1} parent=0 // pred_region
    _
  $region21: #{dq_network.1} parent=0 // pred_fallthru
    _
  // Predicated region
  $region22: #{dq_network.1} parent=0 // pred_check
    _
  $region23: #{dq_network.1} parent=0 // pred_check_branch
    %317 = sbr.rel (0) target = $region25
  $region24: #{dq_network.1} parent=0 // pred_region
    _
  $region25: #{dq_network.1} parent=0 // pred_fallthru
    _

</llo_original>
